<compile_context>
chip_gen: v7x
topology: tpu7x:2x2x1
jax: 0.10.0
libtpu: 0.0.40
codegen_flags: <defaults>
</compile_context>

<pallas_src>
import jax
import jax.numpy as jnp
from jax.experimental import pallas as pl
from jax.experimental.pallas import tpu as pltpu


# ----------------------------------------------------------------------------
# Lane-dense, copy-free 2-D view of the input.
# ----------------------------------------------------------------------------
_LANE = 128


def _lane_dense_2d(x):
    """Reshape x (copy-free) to 2-D with the widest practical last dim."""
    total = x.size
    if total % _LANE == 0:
        # Last dim = 128 * m with m the largest divisor of (total // 128)
        # not exceeding 64  ->  lane width in [128, 8192], fully lane-dense.
        f = total // _LANE
        m = 1
        for cand in range(min(64, f), 0, -1):
            if f % cand == 0:
                m = cand
                break
        width = _LANE * m
        return x.reshape(total // width, width)
    # Not divisible by 128: collapse trailing dims to get the widest last dim
    # (still a copy-free row-major reshape); full-dim blocks stay legal.
    if x.ndim >= 2:
        width = 1
        for d in reversed(x.shape):
            if width * d > 8192 and width >= _LANE:
                break
            width *= d
        return x.reshape(-1, width)
    return x.reshape(total, 1)


# ----------------------------------------------------------------------------
# Primary path: chunked HBM -> HBM DMA (no VMEM staging).
# ----------------------------------------------------------------------------
def _identity_dma(x2d, donate):
    M, K = x2d.shape
    itemsize = jnp.dtype(x2d.dtype).itemsize
    total_bytes = M * K * itemsize

    # 2-4 outstanding DMAs (>= ~1 MiB each) to keep the DMA engines busy;
    # chunk boundaries are aligned to the dtype sublane tile.
    n_target = int(max(1, min(4, M, total_bytes // (1024 * 1024))))
    align = max(8, 32 // itemsize)              # 8 f32 / 16 bf16 / 32 int8
    rows_per = pl.cdiv(M, n_target)
    rows_per = max(align, pl.cdiv(rows_per, align) * align)

    chunks = []
    start = 0
    while start < M:
        size = min(rows_per, M - start)
        chunks.append((start, size))
        start += size
    n_chunks = len(chunks)

    def dma_kernel(x_hbm, o_hbm, sems):
        copies = []
        for idx, (row0, nrows) in enumerate(chunks):   # static Python unroll
            cp = pltpu.make_async_copy(
                x_hbm.at[pl.ds(row0, nrows), :],
                o_hbm.at[pl.ds(row0, nrows), :],
                sems.at[idx],
            )
            cp.start()
            copies.append(cp)
        for cp in copies:
            cp.wait()

    kwargs = {"input_output_aliases": {0: 0}} if donate else {}
    return pl.pallas_call(
        dma_kernel,
        out_shape=jax.ShapeDtypeStruct((M, K), x2d.dtype),
        in_specs=[pl.BlockSpec(memory_space=pl.ANY)],
        out_specs=pl.BlockSpec(memory_space=pl.ANY),
        scratch_shapes=[pltpu.SemaphoreType.DMA((n_chunks,))],
        **kwargs,
    )(x2d)


# ----------------------------------------------------------------------------
# Fallback path: tuned auto-pipelined VMEM-staged blocked copy.
# ----------------------------------------------------------------------------
def _copy_block_kernel(x_ref, o_ref):
    o_ref[...] = x_ref[...]


def _identity_vmem(x2d, donate):
    M, K = x2d.shape
    itemsize = jnp.dtype(x2d.dtype).itemsize
    sublane = max(8, 32 // itemsize)            # dtype-aware sublane multiple
    target_bytes = 4 * 1024 * 1024              # ~4 MiB tiles: near copy roofline,
    vmem_limit = 32 * 1024 * 1024               # 4 buffers = 16 MiB << 32 MiB limit
                                                # (safe on v5e/v6e and v7x's 64 MiB)

    # Lane (last-dim) blocking only for pathologically wide rows; block last
    # dim is otherwise the full K (always legal) and a multiple of 128 when
    # the lane-dense view was used.
    if K * itemsize * sublane <= target_bytes:
        block_cols = K
    else:
        block_cols = max(_LANE,
                         ((target_bytes // (sublane * itemsize)) // _LANE) * _LANE)

    rows = max(1, target_bytes // max(1, block_cols * itemsize))
    rows = max(sublane, (rows // sublane) * sublane)
    block_rows = M if rows >= M else rows

    grid_r = pl.cdiv(M, block_rows)
    grid_c = pl.cdiv(K, block_cols)
    # Ensure >= 2 grid steps for mid-sized tensors so both v7x TensorCores
    # (megacore "parallel" sharding) get work and DMA-in/out pipelines.
    if grid_r * grid_c == 1 and M >= 2 * sublane:
        block_rows = pl.cdiv(pl.cdiv(M, 2), sublane) * sublane
        grid_r = pl.cdiv(M, block_rows)

    kwargs = {"input_output_aliases": {0: 0}} if donate else {}
    return pl.pallas_call(
        _copy_block_kernel,
        out_shape=jax.ShapeDtypeStruct((M, K), x2d.dtype),
        grid=(grid_r, grid_c),
        in_specs=[pl.BlockSpec((block_rows, block_cols), lambda i, j: (i, j))],
        out_specs=pl.BlockSpec((block_rows, block_cols), lambda i, j: (i, j)),
        compiler_params=pltpu.CompilerParams(
            dimension_semantics=("parallel", "parallel"),
            vmem_limit_bytes=vmem_limit,
        ),
        **kwargs,
    )(x2d)


# ----------------------------------------------------------------------------
# Public wrapper.
# ----------------------------------------------------------------------------
def identity(x, *, donate=False):
    """Identity forward: returns a tensor equal to x (same shape, dtype).

    Note: `return x` would be the zero-cost implementation; the kernel launch
    is kept to satisfy the benchmark contract and is a pure HBM->HBM DMA copy.
    Set donate=True only when the caller donates x (enables in-place aliasing).
    """
    if x.ndim == 0 or x.size == 0:
        return x                      # nothing to move

    orig_shape = x.shape
    x2d = _lane_dense_2d(x)           # copy-free lane-dense 2-D view
    try:
        out2d = _identity_dma(x2d, donate)
    except Exception:
        # TODO(synk): drop this fallback once HBM->HBM DMA is confirmed to
        # lower on every target generation; it is only a safety net.
        out2d = _identity_vmem(x2d, donate)
    return out2d.reshape(orig_shape)  # copy-free inverse of the collapse


if __name__ == "__main__":
    key = jax.random.PRNGKey(0)
    x = jax.random.normal(key, (2, 4, 16, 16), dtype=jnp.float32)
    y = identity(x)
    jax.block_until_ready(y)
    assert y.shape == x.shape and y.dtype == x.dtype
    assert bool(jnp.all(y == x))
    print("KERNEL_OK")
</pallas_src>

<mosaic_0001>
module attributes {stable_mosaic.version = 11 : i64} {
  func.func @dma_kernel(%arg0: memref<1x2048xf32, #tpu.memory_space<any>>, %arg1: memref<1x2048xf32, #tpu.memory_space<any>>, %arg2: memref<1x!tpu.dma_semaphore, #tpu.memory_space<semaphore_mem>>) attributes {dimension_semantics = [], scalar_prefetch = 0 : i64, scratch_operands = 1 : i64, tpu.core_type = #tpu.core_type<tc>} {
    %c0_i32 = arith.constant 0 : i32
    %c0_i32_0 = arith.constant 0 : i32
    %c0_i32_1 = arith.constant 0 : i32
    %0 = tpu.memref_slice %arg0[%c0_i32_0, %c0_i32_1] : memref<1x2048xf32, #tpu.memory_space<any>> -> memref<1x2048xf32, #tpu.memory_space<any>>
    %c0_i32_2 = arith.constant 0 : i32
    %c0_i32_3 = arith.constant 0 : i32
    %1 = tpu.memref_slice %arg1[%c0_i32_2, %c0_i32_3] : memref<1x2048xf32, #tpu.memory_space<any>> -> memref<1x2048xf32, #tpu.memory_space<any>>
    %2 = tpu.memref_slice %arg2[%c0_i32] : memref<1x!tpu.dma_semaphore, #tpu.memory_space<semaphore_mem>> -> memref<1x!tpu.dma_semaphore, #tpu.memory_space<semaphore_mem>>
    %3 = tpu.memref_squeeze %2 : memref<1x!tpu.dma_semaphore, #tpu.memory_space<semaphore_mem>> -> memref<!tpu.dma_semaphore, #tpu.memory_space<semaphore_mem>>
    tpu.enqueue_dma source(%0 : memref<1x2048xf32, #tpu.memory_space<any>>) target(%1 : memref<1x2048xf32, #tpu.memory_space<any>>) target_semaphore(%3 : memref<!tpu.dma_semaphore, #tpu.memory_space<semaphore_mem>>)
    %c0_i32_4 = arith.constant 0 : i32
    %c0_i32_5 = arith.constant 0 : i32
    %c0_i32_6 = arith.constant 0 : i32
    %4 = tpu.memref_slice %arg0[%c0_i32_5, %c0_i32_6] : memref<1x2048xf32, #tpu.memory_space<any>> -> memref<1x2048xf32, #tpu.memory_space<any>>
    %c0_i32_7 = arith.constant 0 : i32
    %c0_i32_8 = arith.constant 0 : i32
    %5 = tpu.memref_slice %arg1[%c0_i32_7, %c0_i32_8] : memref<1x2048xf32, #tpu.memory_space<any>> -> memref<1x2048xf32, #tpu.memory_space<any>>
    %6 = tpu.memref_slice %arg2[%c0_i32_4] : memref<1x!tpu.dma_semaphore, #tpu.memory_space<semaphore_mem>> -> memref<1x!tpu.dma_semaphore, #tpu.memory_space<semaphore_mem>>
    %7 = tpu.memref_squeeze %6 : memref<1x!tpu.dma_semaphore, #tpu.memory_space<semaphore_mem>> -> memref<!tpu.dma_semaphore, #tpu.memory_space<semaphore_mem>>
    tpu.wait_dma2 semaphore(%7 : memref<!tpu.dma_semaphore, #tpu.memory_space<semaphore_mem>>) src(%4 : memref<1x2048xf32, #tpu.memory_space<any>>) dst(%5 : memref<1x2048xf32, #tpu.memory_space<any>>)
    return
  }
}

module attributes {stable_mosaic.version = 11 : i64} {
  func.func @_copy_block_kernel(%arg0: i32, %arg1: i32, %arg2: memref<1x2048xf32, #tpu.memory_space<vmem>>, %arg3: memref<1x2048xf32, #tpu.memory_space<vmem>>) attributes {dimension_semantics = [#tpu.dimension_semantics<parallel>, #tpu.dimension_semantics<parallel>], iteration_bounds = array<i64: 1, 1>, scalar_prefetch = 0 : i64, scratch_operands = 0 : i64, tpu.core_type = #tpu.core_type<tc>, window_params = [{transform_indices = @transform_0, window_bounds = array<i64: 1, 2048>}, {transform_indices = @transform_1, window_bounds = array<i64: 1, 2048>}]} {
    %c0 = arith.constant 0 : index
    %c0_0 = arith.constant 0 : index
    %0 = vector.load %arg2[%c0, %c0_0] : memref<1x2048xf32, #tpu.memory_space<vmem>>, vector<1x2048xf32>
    %c0_1 = arith.constant 0 : index
    %c0_2 = arith.constant 0 : index
    %1 = vector.load %arg3[%c0_1, %c0_2] : memref<1x2048xf32, #tpu.memory_space<vmem>>, vector<1x2048xf32>
    tpu.vector_store %arg3[%c0_1, %c0_2], %0 {strides = array<i32>} : memref<1x2048xf32, #tpu.memory_space<vmem>>, vector<1x2048xf32>,
    return
  }
  func.func @transform_0(%arg0: i32, %arg1: i32) -> (i32, i32) {
    %c0_i32 = arith.constant 0 : i32
    return %arg0, %arg1 : i32, i32
  }
  func.func @transform_1(%arg0: i32, %arg1: i32) -> (i32, i32) {
    %c0_i32 = arith.constant 0 : i32
    return %arg0, %arg1 : i32, i32
  }
}

</mosaic_0001>

<llo_original>
// kernel: tpu_custom_call.1
$region0: #{tpu_custom_call.1}
  #allocation0 [shape = 'u32[]', space=smem, size = 0x4, offset = 0x4, fixed_abs, tag = 'smem constant byte address 0x4 - core index']
  #allocation1 [shape = 'u32[144,128]{1,0:T(1,128)}', space=vmem, size = 0x12000, scoped, tag = 'internal scratch']
  #allocation2 [shape = 's32[1]{0}', space=sflag, size = 0x4, scoped, tag = 'scratch operand']
  #allocation3 [shape = 's32[]', space=sflag, size = 0x4, offset = 0, fixed_abs, tag = 'sflag constant byte address 0x0 - dummy sync flag']
  #allocation4 [shape = 'u32[0]{0}', space=smem, size = 0, offset = 0, fixed_abs, tag = 'smem constant byte address 0x0 - null']
  %s0 = inlined_call_operand.hbm [shape: f32[1,2048], index: 0, kind: input, shape index: {}]
  %s1 = inlined_call_operand.hbm [shape: f32[1,2048], index: 1, kind: output, shape index: {}]
  %s2 = sld [smem:[#allocation0]]
  $region2: #{tpu_custom_call.1} parent=0
    _
  %s4 = ssub.s32 1, %s2
  %s5 = scalar_select 0, %s4, %s2
  %s7 = sshll.u32 1, 14
  %s8 = sxor.u32 4294967295, %s7
  %s11 = sshll.u32 3, 24
  %s12 = sxor.u32 4294967295, %s11
  %s13 = sand.u32 0, %s12
  %s15 = sor.u32 %s13, 0
  %18 = dma.general %s0, 256, %s1, [#allocation2], [#allocation3], [#allocation4], %s15, 0
  %s19 = smul.u32 1, 16
  %s20 = sshll.u32 %s19, 4
  %21 = dma.done [#allocation2], %s20
  %22 = vsyncmov [#allocation2]
  %s23 = vpop.sfrf %22
  %p24 = scmp.eq.s32.totalorder %s23, 0
  %p25 = pneg %p24
  %27 = shalt.err (%p25)

// kernel: tpu_custom_call.1
$region0: #{tpu_custom_call.1}
  #allocation0 [shape = 'u32[]', space=smem, size = 0x4, offset = 0x4, fixed_abs, tag = 'smem constant byte address 0x4 - core index']
  #allocation1 [shape = 'u32[144,128]{1,0:T(1,128)}', space=vmem, size = 0x12000, scoped, tag = 'internal scratch']
  %s0 = inlined_call_operand.hbm [shape: f32[1,2048], index: 0, kind: input, shape index: {}]
  %s1 = inlined_call_operand.hbm [shape: f32[1,2048], index: 1, kind: output, shape index: {}]
  %s2 = sld [smem:[#allocation0]]
  $region18: #{tpu_custom_call.1} parent=0
    _
  %s4 = ssub.s32 1, %s2
  %s5 = scalar_select 0, %s4, %s2
  $region1: #{tpu_custom_call.1} parent=0
    #allocation2 [shape = 'u8[8192]{0}', space=vmem, size = 0x2000, scoped, tag = 'input window, operand 0, single buffered']
    #allocation3 [shape = 's32[1]{0}', space=sflag, size = 0x4, scoped, tag = 'scoped memory for tpu_custom_call.1']
    #allocation4 [shape = 's32[1]{0}', space=sflag, size = 0x4, scoped, tag = 'scoped memory for tpu_custom_call.1']
    #allocation5 [shape = 'u8[8192]{0}', space=vmem, size = 0x2000, scoped, tag = 'output window, operand 0, single buffered']
    %6 = vsyncpa [#allocation3], 0
    %7 = vsyncpa [#allocation4], 0
    // Predicated region
    $region2: #{tpu_custom_call.1} parent=1 // pred_check
      _
    $region3: #{tpu_custom_call.1} parent=1 // pred_check_branch
      %9 = sbr.rel (0) target = $region5
    $region4: #{tpu_custom_call.1} parent=1 // pred_region
      %s11 = ssub.s32 256, 256
      %12 = vsyncadd [#allocation3], %s11
      %s14 = sshll.u32 [#allocation2], 4
      %s15 = int_to_ptr.vmem [resolvable:$true] %s14
      %17 = dma.hbm_to_vmem [thread:$0]  %s0, 256, %s15, [#allocation3]
    $region5: #{tpu_custom_call.1} parent=1 // pred_fallthru
      _
    // Predicated region
    $region6: #{tpu_custom_call.1} parent=1 // pred_check
      _
    $region7: #{tpu_custom_call.1} parent=1 // pred_check_branch
      %19 = sbr.rel (0) target = $region9
    $region8: #{tpu_custom_call.1} parent=1 // pred_region
      %20 = dma.done [#allocation3], 256
    $region9: #{tpu_custom_call.1} parent=1 // pred_fallthru
      _
    %v21 = vld [vmem:[#allocation2] sm:$0xff]
    %v22 = vld [vmem:[#allocation2 + $0x8] sm:$0xff]
    %23 = vst [vmem:[#allocation5] sm:$0xff] %v21
    %24 = vst [vmem:[#allocation5 + $0x8] sm:$0xff] %v22
    // Predicated region
    $region10: #{tpu_custom_call.1} parent=1 // pred_check
      _
    $region11: #{tpu_custom_call.1} parent=1 // pred_check_branch
      %26 = sbr.rel (0) target = $region13
    $region12: #{tpu_custom_call.1} parent=1 // pred_region
      %s28 = ssub.s32 256, 256
      %29 = vsyncadd [#allocation4], %s28
      %s31 = sshll.u32 [#allocation5], 4
      %s32 = int_to_ptr.vmem [resolvable:$true] %s31
      %34 = dma.vmem_to_hbm [thread:$0]  %s32, 256, %s1, [#allocation4]
    $region13: #{tpu_custom_call.1} parent=1 // pred_fallthru
      _
    // Predicated region
    $region14: #{tpu_custom_call.1} parent=1 // pred_check
      _
    $region15: #{tpu_custom_call.1} parent=1 // pred_check_branch
      %36 = sbr.rel (0) target = $region17
    $region16: #{tpu_custom_call.1} parent=1 // pred_region
      %37 = dma.done [#allocation4], 256
    $region17: #{tpu_custom_call.1} parent=1 // pred_fallthru
      _
    %38 = vsyncpa [#allocation3], 1
    %39 = vsyncpa [#allocation4], 1

</llo_original>
